<compile_context>
chip_gen: v5e
topology: v5e:2x2
jax: 0.10.0
libtpu: 0.0.40
codegen_flags: <defaults>
</compile_context>

<pallas_src>
import functools

import jax
import jax.numpy as jnp
from jax.experimental import pallas as pl
from jax.experimental.pallas import tpu as pltpu

N_STATES = 24
N_ACTIONS = 5
HIDDEN = 128          # fc1/fc2 width
OUT_PAD = 128         # lane-dense (zero-padded) output head width
DROPOUT_P = 0.5       # F.dropout default (training=True by default in the functional form)

# keep iff bits < (1 - p) * 2^32  (full 32-bit threshold compare, not LSB)
_KEEP_THRESHOLD = min(int(round((1.0 - DROPOUT_P) * (1 << 32))), (1 << 32) - 1)


def _dqn_kernel(*refs, apply_dropout):
    if apply_dropout:
        (x_ref, w1_ref, b1_ref, w2_ref, b2_ref, w3_ref, b3_ref,
         bits_ref, out_ref) = refs
    else:
        (x_ref, w1_ref, b1_ref, w2_ref, b2_ref, w3_ref, b3_ref,
         out_ref) = refs

    x = x_ref[...]

    # fc1 + relu
    h1 = jnp.dot(x, w1_ref[...], preferred_element_type=jnp.float32) + b1_ref[...]
    h1 = jnp.maximum(h1, 0.0)

    # fc2 + relu
    h2 = jnp.dot(h1, w2_ref[...], preferred_element_type=jnp.float32) + b2_ref[...]
    h2 = jnp.maximum(h2, 0.0)

    # fc2 applied a second time — faithful to the reference forward()
    h3 = jnp.dot(h2, w2_ref[...], preferred_element_type=jnp.float32) + b2_ref[...]

    if apply_dropout:
        keep = bits_ref[...] < jnp.uint32(_KEEP_THRESHOLD)
        h3 = jnp.where(keep, h3 * (1.0 / (1.0 - DROPOUT_P)), 0.0)

    # output head (zero-padded to OUT_PAD lanes -> unmasked full-width stores)
    out = jnp.dot(h3, w3_ref[...], preferred_element_type=jnp.float32) + b3_ref[...]
    out_ref[...] = out.astype(out_ref.dtype)


def _round_up(n, m):
    return ((n + m - 1) // m) * m


@functools.partial(jax.jit, static_argnames=("training",))
def dqn_forward(x, w1, b1, w2, b2, w3p, b3p, key, training=True):
    """Q-values. w3p/b3p must be zero-padded to OUT_PAD columns (see init_params)."""
    B = x.shape[0]

    # Pad batch: sublane-align small batches; 128-row tiles for large ones.
    if B <= 128:
        b_pad = _round_up(B, 8)
        tile_b = b_pad
    else:
        tile_b = 128
        b_pad = _round_up(B, tile_b)
    if b_pad != B:
        x = jnp.pad(x, ((0, b_pad - B), (0, 0)))

    kernel = functools.partial(_dqn_kernel, apply_dropout=training)

    inputs = [x, w1, b1, w2, b2, w3p, b3p]
    if training:
        # Distinct random bits per batch row (no correlated dropout across tiles/cores).
        bits = jax.random.bits(key, (b_pad, HIDDEN), dtype=jnp.uint32)
        inputs.append(bits)

    out_shape = jax.ShapeDtypeStruct((b_pad, OUT_PAD), jnp.float32)
    num_tiles = b_pad // tile_b

    if num_tiles == 1:
        # Single step: no grid -> no pipeline prologue/epilogue, no double-buffering.
        # Everything (~80 KB weights + tiny activations) sits in VMEM directly.
        vmem = pl.BlockSpec(memory_space=pltpu.MemorySpace.VMEM)
        out = pl.pallas_call(
            kernel,
            out_shape=out_shape,
            in_specs=[vmem] * len(inputs),
            out_specs=vmem,
        )(*inputs)
    else:
        # Batch-tiled grid. Weights/biases use block index (0, 0) for every tile so
        # they stay VMEM-resident; batch axis is "parallel" (megacore / v7x 2-TC split).
        def row_spec(cols):
            return pl.BlockSpec((tile_b, cols), lambda i: (i, 0))

        def fixed_spec(shape):
            return pl.BlockSpec(shape, lambda i: (0, 0))

        in_specs = [
            row_spec(N_STATES),                 # x
            fixed_spec((N_STATES, HIDDEN)),     # w1
            fixed_spec((1, HIDDEN)),            # b1
            fixed_spec((HIDDEN, HIDDEN)),       # w2
            fixed_spec((1, HIDDEN)),            # b2
            fixed_spec((HIDDEN, OUT_PAD)),      # w3 (padded)
            fixed_spec((1, OUT_PAD)),           # b3 (padded)
        ]
        if training:
            in_specs.append(row_spec(HIDDEN))   # dropout bits

        out = pl.pallas_call(
            kernel,
            out_shape=out_shape,
            grid=(num_tiles,),
            in_specs=in_specs,
            out_specs=row_spec(OUT_PAD),
            compiler_params=pltpu.CompilerParams(
                dimension_semantics=("parallel",)),
        )(*inputs)

    # Strip batch padding and the lane padding of the output head.
    return out[:B, :N_ACTIONS]


def init_params(key):
    """Weights ~ N(0, 0.1) (as in the module); biases use the PyTorch Linear default
    U(-1/sqrt(fan_in), 1/sqrt(fan_in)). Weights stored as (in, out); the output head
    is zero-padded to OUT_PAD columns for lane-dense stores."""
    ks = jax.random.split(key, 6)

    def lin(kw, kb, fan_in, fan_out, pad_to=None):
        w = 0.1 * jax.random.normal(kw, (fan_in, fan_out), dtype=jnp.float32)
        bound = 1.0 / float(fan_in) ** 0.5
        b = jax.random.uniform(kb, (1, fan_out), dtype=jnp.float32,
                               minval=-bound, maxval=bound)
        if pad_to is not None and pad_to > fan_out:
            w = jnp.pad(w, ((0, 0), (0, pad_to - fan_out)))
            b = jnp.pad(b, ((0, 0), (0, pad_to - fan_out)))
        return w, b

    w1, b1 = lin(ks[0], ks[1], N_STATES, HIDDEN)
    w2, b2 = lin(ks[2], ks[3], HIDDEN, HIDDEN)
    w3p, b3p = lin(ks[4], ks[5], HIDDEN, N_ACTIONS, pad_to=OUT_PAD)
    return w1, b1, w2, b2, w3p, b3p


if __name__ == "__main__":
    key = jax.random.PRNGKey(0)
    k_param, k_x, k_drop = jax.random.split(key, 3)

    w1, b1, w2, b2, w3p, b3p = init_params(k_param)

    # Small batch -> single-block (no-grid) path, training=True (matches F.dropout default).
    B = 8
    x = jax.random.normal(k_x, (B, N_STATES), dtype=jnp.float32)
    q_train = dqn_forward(x, w1, b1, w2, b2, w3p, b3p, k_drop, training=True)
    jax.block_until_ready(q_train)
    assert q_train.shape == (B, N_ACTIONS)
    assert q_train.dtype == jnp.float32

    # Eval mode (dropout = identity) checked against a pure-JAX reference.
    q_eval = dqn_forward(x, w1, b1, w2, b2, w3p, b3p, k_drop, training=False)
    jax.block_until_ready(q_eval)

    def ref_eval(xx):
        h1 = jnp.maximum(xx @ w1 + b1, 0.0)
        h2 = jnp.maximum(h1 @ w2 + b2, 0.0)
        h3 = h2 @ w2 + b2
        return (h3 @ w3p + b3p)[:, :N_ACTIONS]

    ref = ref_eval(x)
    assert jnp.allclose(q_eval, ref, rtol=2e-2, atol=2e-2), \
        float(jnp.max(jnp.abs(q_eval - ref)))

    # Larger batch -> batch-tiled grid path (weights VMEM-resident across tiles,
    # batch axis "parallel" so v7x's two TensorCores can split it).
    B2 = 256
    x2 = jax.random.normal(k_x, (B2, N_STATES), dtype=jnp.float32)
    q2 = dqn_forward(x2, w1, b1, w2, b2, w3p, b3p, k_drop, training=True)
    jax.block_until_ready(q2)
    assert q2.shape == (B2, N_ACTIONS)

    print("KERNEL_OK")
</pallas_src>

<mosaic_0001>
module attributes {stable_mosaic.version = 11 : i64} {
  func.func @_dqn_kernel(%arg0: memref<8x24xf32, #tpu.memory_space<vmem>>, %arg1: memref<24x128xf32, #tpu.memory_space<vmem>>, %arg2: memref<1x128xf32, #tpu.memory_space<vmem>>, %arg3: memref<128x128xf32, #tpu.memory_space<vmem>>, %arg4: memref<1x128xf32, #tpu.memory_space<vmem>>, %arg5: memref<128x128xf32, #tpu.memory_space<vmem>>, %arg6: memref<1x128xf32, #tpu.memory_space<vmem>>, %arg7: memref<8x128xi32, #tpu.memory_space<vmem>>, %arg8: memref<8x128xf32, #tpu.memory_space<vmem>>) attributes {dimension_semantics = [], scalar_prefetch = 0 : i64, scratch_operands = 0 : i64, tpu.core_type = #tpu.core_type<tc>} {
    %c0 = arith.constant 0 : index
    %c0_0 = arith.constant 0 : index
    %0 = vector.load %arg0[%c0, %c0_0] : memref<8x24xf32, #tpu.memory_space<vmem>>, vector<8x24xf32>
    %c0_1 = arith.constant 0 : index
    %c0_2 = arith.constant 0 : index
    %1 = vector.load %arg1[%c0_1, %c0_2] : memref<24x128xf32, #tpu.memory_space<vmem>>, vector<24x128xf32>
    %cst = arith.constant dense<0.000000e+00> : vector<8x128xf32>
    %2 = tpu.matmul %0, %1, %cst {dimension_numbers = #tpu.dot_dimension_numbers<[1], [0], [0], [1], [0, 0, 1, 1], [], []>} : vector<8x24xf32>, vector<24x128xf32>, vector<8x128xf32> -> vector<8x128xf32>
    %c0_3 = arith.constant 0 : index
    %c0_4 = arith.constant 0 : index
    %3 = vector.load %arg2[%c0_3, %c0_4] : memref<1x128xf32, #tpu.memory_space<vmem>>, vector<1x128xf32>
    %4 = vector.broadcast %3 : vector<1x128xf32> to vector<8x128xf32>
    %5 = arith.addf %2, %4 : vector<8x128xf32>
    %cst_5 = arith.constant 0.000000e+00 : f32
    %6 = vector.broadcast %cst_5 : f32 to vector<8x128xf32>
    %7 = arith.maximumf %5, %6 : vector<8x128xf32>
    %c0_6 = arith.constant 0 : index
    %c0_7 = arith.constant 0 : index
    %8 = vector.load %arg3[%c0_6, %c0_7] : memref<128x128xf32, #tpu.memory_space<vmem>>, vector<128x128xf32>
    %cst_8 = arith.constant dense<0.000000e+00> : vector<8x128xf32>
    %9 = tpu.matmul %7, %8, %cst_8 {dimension_numbers = #tpu.dot_dimension_numbers<[1], [0], [0], [1], [0, 0, 1, 1], [], []>} : vector<8x128xf32>, vector<128x128xf32>, vector<8x128xf32> -> vector<8x128xf32>
    %c0_9 = arith.constant 0 : index
    %c0_10 = arith.constant 0 : index
    %10 = vector.load %arg4[%c0_9, %c0_10] : memref<1x128xf32, #tpu.memory_space<vmem>>, vector<1x128xf32>
    %11 = vector.broadcast %10 : vector<1x128xf32> to vector<8x128xf32>
    %12 = arith.addf %9, %11 : vector<8x128xf32>
    %cst_11 = arith.constant 0.000000e+00 : f32
    %13 = vector.broadcast %cst_11 : f32 to vector<8x128xf32>
    %14 = arith.maximumf %12, %13 : vector<8x128xf32>
    %c0_12 = arith.constant 0 : index
    %c0_13 = arith.constant 0 : index
    %15 = vector.load %arg3[%c0_12, %c0_13] : memref<128x128xf32, #tpu.memory_space<vmem>>, vector<128x128xf32>
    %cst_14 = arith.constant dense<0.000000e+00> : vector<8x128xf32>
    %16 = tpu.matmul %14, %15, %cst_14 {dimension_numbers = #tpu.dot_dimension_numbers<[1], [0], [0], [1], [0, 0, 1, 1], [], []>} : vector<8x128xf32>, vector<128x128xf32>, vector<8x128xf32> -> vector<8x128xf32>
    %c0_15 = arith.constant 0 : index
    %c0_16 = arith.constant 0 : index
    %17 = vector.load %arg4[%c0_15, %c0_16] : memref<1x128xf32, #tpu.memory_space<vmem>>, vector<1x128xf32>
    %18 = vector.broadcast %17 : vector<1x128xf32> to vector<8x128xf32>
    %19 = arith.addf %16, %18 : vector<8x128xf32>
    %c0_17 = arith.constant 0 : index
    %c0_18 = arith.constant 0 : index
    %20 = vector.load %arg7[%c0_17, %c0_18] : memref<8x128xi32, #tpu.memory_space<vmem>>, vector<8x128xi32>
    %c-2147483648_i32 = arith.constant -2147483648 : i32
    %21 = vector.broadcast %c-2147483648_i32 : i32 to vector<8x128xi32>
    %22 = arith.cmpi ult, %20, %21 : vector<8x128xi32>
    %cst_19 = arith.constant 2.000000e+00 : f32
    %23 = vector.broadcast %cst_19 : f32 to vector<8x128xf32>
    %24 = arith.mulf %19, %23 : vector<8x128xf32>
    %cst_20 = arith.constant 0.000000e+00 : f32
    %25 = vector.broadcast %cst_20 : f32 to vector<8x128xf32>
    %26 = arith.select %22, %24, %25 : vector<8x128xi1>, vector<8x128xf32>
    %c0_21 = arith.constant 0 : index
    %c0_22 = arith.constant 0 : index
    %27 = vector.load %arg5[%c0_21, %c0_22] : memref<128x128xf32, #tpu.memory_space<vmem>>, vector<128x128xf32>
    %cst_23 = arith.constant dense<0.000000e+00> : vector<8x128xf32>
    %28 = tpu.matmul %26, %27, %cst_23 {dimension_numbers = #tpu.dot_dimension_numbers<[1], [0], [0], [1], [0, 0, 1, 1], [], []>} : vector<8x128xf32>, vector<128x128xf32>, vector<8x128xf32> -> vector<8x128xf32>
    %c0_24 = arith.constant 0 : index
    %c0_25 = arith.constant 0 : index
    %29 = vector.load %arg6[%c0_24, %c0_25] : memref<1x128xf32, #tpu.memory_space<vmem>>, vector<1x128xf32>
    %30 = vector.broadcast %29 : vector<1x128xf32> to vector<8x128xf32>
    %31 = arith.addf %28, %30 : vector<8x128xf32>
    %c0_26 = arith.constant 0 : index
    %c0_27 = arith.constant 0 : index
    %32 = vector.load %arg8[%c0_26, %c0_27] : memref<8x128xf32, #tpu.memory_space<vmem>>, vector<8x128xf32>
    tpu.vector_store %arg8[%c0_26, %c0_27], %31 {strides = array<i32>} : memref<8x128xf32, #tpu.memory_space<vmem>>, vector<8x128xf32>,
    return
  }
}

</mosaic_0001>

<llo_original>
// kernel: dqn_forward.1
$region0: #{dqn_forward.1}
  #allocation0 [shape = 'u32[]', space=smem, size = 0x4, offset = 0x4, fixed_abs, tag = 'smem constant byte address 0x4 - core index']
  #allocation1 [shape = 'u32[72,128]{1,0:T(1,128)}', space=vmem, size = 0x9000, scoped, tag = 'internal scratch']
  %s0 = inlined_call_operand.hbm [shape: f32[8,24], index: 0, kind: input, shape index: {}]
  %s1 = inlined_call_operand.vmem [shape: f32[24,128], index: 1, kind: input, shape index: {}]
  %s2 = inlined_call_operand.vmem [shape: f32[1,128], index: 2, kind: input, shape index: {}]
  %s3 = inlined_call_operand.hbm [shape: f32[128,128], index: 3, kind: input, shape index: {}]
  %s4 = inlined_call_operand.vmem [shape: f32[1,128], index: 4, kind: input, shape index: {}]
  %s5 = inlined_call_operand.hbm [shape: f32[128,128], index: 5, kind: input, shape index: {}]
  %s6 = inlined_call_operand.vmem [shape: f32[1,128], index: 6, kind: input, shape index: {}]
  %s7 = inlined_call_operand.vmem [shape: u32[8,128], index: 7, kind: input, shape index: {}]
  %s8 = inlined_call_operand.hbm [shape: f32[8,128], index: 8, kind: output, shape index: {}]
  %s9 = sld [smem:[#allocation0]]
  $region54: #{dqn_forward.1} parent=0
    _
  %s11 = ssub.s32 1, %s9
  %s12 = scalar_select 0, %s11, %s9
  $region1: #{dqn_forward.1} parent=0
    #allocation2 [shape = 'u8[4096]{0}', space=vmem, size = 0x1000, scoped, tag = 'input window, operand 0, single buffered']
    #allocation3 [shape = 's32[1]{0}', space=sflag, size = 0x4, scoped, tag = 'scoped memory for dqn_forward.1']
    #allocation4 [shape = 's32[1]{0}', space=sflag, size = 0x4, scoped, tag = 'scoped memory for dqn_forward.1']
    #allocation5 [shape = 'u8[65536]{0}', space=vmem, size = 0x10000, scoped, tag = 'input window, operand 3, single buffered']
    #allocation6 [shape = 's32[1]{0}', space=sflag, size = 0x4, scoped, tag = 'scoped memory for dqn_forward.1']
    #allocation7 [shape = 'u8[65536]{0}', space=vmem, size = 0x10000, scoped, tag = 'input window, operand 5, single buffered']
    #allocation8 [shape = 'u8[4096]{0}', space=vmem, size = 0x1000, scoped, tag = 'output window, operand 0, single buffered']
    %13 = vsyncpa [#allocation3], 0
    %14 = vsyncpa [#allocation6], 0
    %15 = vsyncpa [#allocation4], 0
    // Predicated region
    $region2: #{dqn_forward.1} parent=1 // pred_check
      _
    $region3: #{dqn_forward.1} parent=1 // pred_check_branch
      %17 = sbr.rel (0) target = $region5
    $region4: #{dqn_forward.1} parent=1 // pred_region
      %19 = vsyncadd [#allocation3], 0
      %s21 = sshll.u32 %s0, 4
      %s22 = int_to_ptr.hbm [resolvable:$true] %s21
      %s23 = sshll.u32 [#allocation2], 4
      %s24 = int_to_ptr.vmem [resolvable:$true] %s23
      %26 = dma.hbm_to_vmem [thread:$0]  %s22, 128, %s24, [#allocation3]
    $region5: #{dqn_forward.1} parent=1 // pred_fallthru
      _
    // Predicated region
    $region6: #{dqn_forward.1} parent=1 // pred_check
      _
    $region7: #{dqn_forward.1} parent=1 // pred_check_branch
      %28 = sbr.rel (0) target = $region9
    $region8: #{dqn_forward.1} parent=1 // pred_region
      _
    $region9: #{dqn_forward.1} parent=1 // pred_fallthru
      _
    // Predicated region
    $region10: #{dqn_forward.1} parent=1 // pred_check
      _
    $region11: #{dqn_forward.1} parent=1 // pred_check_branch
      %30 = sbr.rel (0) target = $region13
    $region12: #{dqn_forward.1} parent=1 // pred_region
      _
    $region13: #{dqn_forward.1} parent=1 // pred_fallthru
      _
    // Predicated region
    $region14: #{dqn_forward.1} parent=1 // pred_check
      _
    $region15: #{dqn_forward.1} parent=1 // pred_check_branch
      %32 = sbr.rel (0) target = $region17
    $region16: #{dqn_forward.1} parent=1 // pred_region
      %34 = vsyncadd [#allocation6], 0
      %s35 = sshll.u32 %s3, 4
      %s36 = int_to_ptr.hbm [resolvable:$true] %s35
      %s37 = sshll.u32 [#allocation5], 4
      %s38 = int_to_ptr.vmem [resolvable:$true] %s37
      %43 = dma.hbm_to_vmem [thread:$0]  %s36, 2048, %s38, [#allocation6], 128, 128, 8
    $region17: #{dqn_forward.1} parent=1 // pred_fallthru
      _
    // Predicated region
    $region18: #{dqn_forward.1} parent=1 // pred_check
      _
    $region19: #{dqn_forward.1} parent=1 // pred_check_branch
      %45 = sbr.rel (0) target = $region21
    $region20: #{dqn_forward.1} parent=1 // pred_region
      _
    $region21: #{dqn_forward.1} parent=1 // pred_fallthru
      _
    // Predicated region
    $region22: #{dqn_forward.1} parent=1 // pred_check
      _
    $region23: #{dqn_forward.1} parent=1 // pred_check_branch
      %47 = sbr.rel (0) target = $region25
    $region24: #{dqn_forward.1} parent=1 // pred_region
      %49 = vsyncadd [#allocation6], 0
      %s50 = sshll.u32 %s5, 4
      %s51 = int_to_ptr.hbm [resolvable:$true] %s50
      %s52 = sshll.u32 [#allocation7], 4
      %s53 = int_to_ptr.vmem [resolvable:$true] %s52
      %58 = dma.hbm_to_vmem [thread:$0]  %s51, 2048, %s53, [#allocation6], 128, 128, 8
    $region25: #{dqn_forward.1} parent=1 // pred_fallthru
      _
    // Predicated region
    $region26: #{dqn_forward.1} parent=1 // pred_check
      _
    $region27: #{dqn_forward.1} parent=1 // pred_check_branch
      %60 = sbr.rel (0) target = $region29
    $region28: #{dqn_forward.1} parent=1 // pred_region
      _
    $region29: #{dqn_forward.1} parent=1 // pred_fallthru
      _
    // Predicated region
    $region30: #{dqn_forward.1} parent=1 // pred_check
      _
    $region31: #{dqn_forward.1} parent=1 // pred_check_branch
      %62 = sbr.rel (0) target = $region33
    $region32: #{dqn_forward.1} parent=1 // pred_region
      _
    $region33: #{dqn_forward.1} parent=1 // pred_fallthru
      _
    // Predicated region
    $region34: #{dqn_forward.1} parent=1 // pred_check
      _
    $region35: #{dqn_forward.1} parent=1 // pred_check_branch
      %64 = sbr.rel (0) target = $region37
    $region36: #{dqn_forward.1} parent=1 // pred_region
      %66 = dma.done [#allocation3], 128
    $region37: #{dqn_forward.1} parent=1 // pred_fallthru
      _
    // Predicated region
    $region38: #{dqn_forward.1} parent=1 // pred_check
      _
    $region39: #{dqn_forward.1} parent=1 // pred_check_branch
      %68 = sbr.rel (0) target = $region41
    $region40: #{dqn_forward.1} parent=1 // pred_region
      %70 = dma.done [#allocation6], 2048
    $region41: #{dqn_forward.1} parent=1 // pred_fallthru
      _
    // Predicated region
    $region42: #{dqn_forward.1} parent=1 // pred_check
      _
    $region43: #{dqn_forward.1} parent=1 // pred_check_branch
      %72 = sbr.rel (0) target = $region45
    $region44: #{dqn_forward.1} parent=1 // pred_region
      %74 = dma.done [#allocation6], 2048
    $region45: #{dqn_forward.1} parent=1 // pred_fallthru
      _
    %v75 = vld [vmem:[#allocation2] sm:$0xff]
    %v76 = vld [vmem:[%s1] sm:$0xff]
    %v77 = vld [vmem:[%s1 + $0x8] sm:$0xff]
    %v78 = vld [vmem:[%s1 + $0x10] sm:$0xff]
    %v79 = vld [vmem:[%s2] sm:$0x1]
    %v81 = vperm.slane %v79, 0
    %vm83 = vcmask 195584
    %v85 = vsel %vm83, %v75, 0
    %87 = vmatpush.msra.mxu0 0.0
    %88 = vmatpush.msra.mxu0 0.0
    %89 = vmatpush.msra.mxu0 0.0
    %90 = vmatpush.msra.mxu0 0.0
    %91 = vmatpush.msra.mxu0 0.0
    %92 = vmatpush.msra.mxu0 0.0
    %93 = vmatpush.msra.mxu0 0.0
    %94 = vmatpush.msra.mxu0 0.0
    %95 = vmatpush.msra.mxu0 0.0
    %96 = vmatpush.msra.mxu0 0.0
    %97 = vmatpush.msra.mxu0 0.0
    %98 = vmatpush.msra.mxu0 0.0
    %99 = vmatpush.msra.mxu0 0.0
    %100 = vmatpush.msra.mxu0 %v78
    %101 = vmatpush.msra.mxu0 %v77
    %102 = vmatpush.msra.mxu0 %v76
    %103 = vmatmul.f32.gmra.mxu0 %v85
    %v104 = vpop.f32.mrf.mxu0
    %v105 = vadd.f32 %v81, %v104
    %106 = vdwg.mxu0
    %v107 = vmax.f32 %v105, 0.0
    %v108 = vld [vmem:[#allocation5] sm:$0xff]
    %v109 = vld [vmem:[#allocation5 + $0x8] sm:$0xff]
    %v110 = vld [vmem:[#allocation5 + $0x10] sm:$0xff]
    %v111 = vld [vmem:[#allocation5 + $0x18] sm:$0xff]
    %v112 = vld [vmem:[#allocation5 + $0x20] sm:$0xff]
    %v113 = vld [vmem:[#allocation5 + $0x28] sm:$0xff]
    %v114 = vld [vmem:[#allocation5 + $0x30] sm:$0xff]
    %v115 = vld [vmem:[#allocation5 + $0x38] sm:$0xff]
    %v116 = vld [vmem:[#allocation5 + $0x40] sm:$0xff]
    %v117 = vld [vmem:[#allocation5 + $0x48] sm:$0xff]
    %v118 = vld [vmem:[#allocation5 + $0x50] sm:$0xff]
    %v119 = vld [vmem:[#allocation5 + $0x58] sm:$0xff]
    %v120 = vld [vmem:[#allocation5 + $0x60] sm:$0xff]
    %v121 = vld [vmem:[#allocation5 + $0x68] sm:$0xff]
    %v122 = vld [vmem:[#allocation5 + $0x70] sm:$0xff]
    %v123 = vld [vmem:[#allocation5 + $0x78] sm:$0xff]
    %v124 = vld [vmem:[%s4] sm:$0x1]
    %v126 = vperm.slane %v124, 0
    %128 = vmatpush.msra.mxu0 %v123
    %129 = vmatpush.msra.mxu0 %v122
    %130 = vmatpush.msra.mxu0 %v121
    %131 = vmatpush.msra.mxu0 %v120
    %132 = vmatpush.msra.mxu0 %v119
    %133 = vmatpush.msra.mxu0 %v118
    %134 = vmatpush.msra.mxu0 %v117
    %135 = vmatpush.msra.mxu0 %v116
    %136 = vmatpush.msra.mxu0 %v115
    %137 = vmatpush.msra.mxu0 %v114
    %138 = vmatpush.msra.mxu0 %v113
    %139 = vmatpush.msra.mxu0 %v112
    %140 = vmatpush.msra.mxu0 %v111
    %141 = vmatpush.msra.mxu0 %v110
    %142 = vmatpush.msra.mxu0 %v109
    %143 = vmatpush.msra.mxu0 %v108
    %144 = vmatmul.f32.gmra.mxu0 %v107
    %v145 = vpop.f32.mrf.mxu0
    %v146 = vadd.f32 %v126, %v145
    %147 = vdwg.mxu0
    %v148 = vmax.f32 %v146, 0.0
    %149 = vmatpush.msra.mxu0 %v123
    %150 = vmatpush.msra.mxu0 %v122
    %151 = vmatpush.msra.mxu0 %v121
    %152 = vmatpush.msra.mxu0 %v120
    %153 = vmatpush.msra.mxu0 %v119
    %154 = vmatpush.msra.mxu0 %v118
    %155 = vmatpush.msra.mxu0 %v117
    %156 = vmatpush.msra.mxu0 %v116
    %157 = vmatpush.msra.mxu0 %v115
    %158 = vmatpush.msra.mxu0 %v114
    %159 = vmatpush.msra.mxu0 %v113
    %160 = vmatpush.msra.mxu0 %v112
    %161 = vmatpush.msra.mxu0 %v111
    %162 = vmatpush.msra.mxu0 %v110
    %163 = vmatpush.msra.mxu0 %v109
    %164 = vmatpush.msra.mxu0 %v108
    %165 = vmatmul.f32.gmra.mxu0 %v148
    %v166 = vpop.f32.mrf.mxu0
    %v167 = vadd.f32 %v126, %v166
    %168 = vdwg.mxu0
    %v169 = vld [vmem:[%s7] sm:$0xff]
    %v170 = vadd.s32 %v169, 2147483648
    %vm172 = vcmp.lt.s32.totalorder %v170, 0
    %v173 = vmul.f32 %v167, 2.0
    %v174 = vsel %vm172, %v173, 0.0
    %v175 = vld [vmem:[#allocation7] sm:$0xff]
    %v176 = vld [vmem:[#allocation7 + $0x8] sm:$0xff]
    %v177 = vld [vmem:[#allocation7 + $0x10] sm:$0xff]
    %v178 = vld [vmem:[#allocation7 + $0x18] sm:$0xff]
    %v179 = vld [vmem:[#allocation7 + $0x20] sm:$0xff]
    %v180 = vld [vmem:[#allocation7 + $0x28] sm:$0xff]
    %v181 = vld [vmem:[#allocation7 + $0x30] sm:$0xff]
    %v182 = vld [vmem:[#allocation7 + $0x38] sm:$0xff]
    %v183 = vld [vmem:[#allocation7 + $0x40] sm:$0xff]
    %v184 = vld [vmem:[#allocation7 + $0x48] sm:$0xff]
    %v185 = vld [vmem:[#allocation7 + $0x50] sm:$0xff]
    %v186 = vld [vmem:[#allocation7 + $0x58] sm:$0xff]
    %v187 = vld [vmem:[#allocation7 + $0x60] sm:$0xff]
    %v188 = vld [vmem:[#allocation7 + $0x68] sm:$0xff]
    %v189 = vld [vmem:[#allocation7 + $0x70] sm:$0xff]
    %v190 = vld [vmem:[#allocation7 + $0x78] sm:$0xff]
    %v191 = vld [vmem:[%s6] sm:$0x1]
    %v193 = vperm.slane %v191, 0
    %195 = vmatpush.msra.mxu0 %v190
    %196 = vmatpush.msra.mxu0 %v189
    %197 = vmatpush.msra.mxu0 %v188
    %198 = vmatpush.msra.mxu0 %v187
    %199 = vmatpush.msra.mxu0 %v186
    %200 = vmatpush.msra.mxu0 %v185
    %201 = vmatpush.msra.mxu0 %v184
    %202 = vmatpush.msra.mxu0 %v183
    %203 = vmatpush.msra.mxu0 %v182
    %204 = vmatpush.msra.mxu0 %v181
    %205 = vmatpush.msra.mxu0 %v180
    %206 = vmatpush.msra.mxu0 %v179
    %207 = vmatpush.msra.mxu0 %v178
    %208 = vmatpush.msra.mxu0 %v177
    %209 = vmatpush.msra.mxu0 %v176
    %210 = vmatpush.msra.mxu0 %v175
    %211 = vmatmul.f32.gmra.mxu0 %v174
    %v212 = vpop.f32.mrf.mxu0
    %v213 = vadd.f32 %v193, %v212
    %214 = vdwg.mxu0
    %215 = vst [vmem:[#allocation8] sm:$0xff] %v213
    // Predicated region
    $region46: #{dqn_forward.1} parent=1 // pred_check
      _
    $region47: #{dqn_forward.1} parent=1 // pred_check_branch
      %217 = sbr.rel (0) target = $region49
    $region48: #{dqn_forward.1} parent=1 // pred_region
      %219 = vsyncadd [#allocation4], 0
      %s221 = sshll.u32 [#allocation8], 4
      %s222 = int_to_ptr.vmem [resolvable:$true] %s221
      %s223 = sshll.u32 %s8, 4
      %s224 = int_to_ptr.hbm [resolvable:$true] %s223
      %226 = dma.vmem_to_hbm [thread:$0]  %s222, 128, %s224, [#allocation4]
    $region49: #{dqn_forward.1} parent=1 // pred_fallthru
      _
    // Predicated region
    $region50: #{dqn_forward.1} parent=1 // pred_check
      _
    $region51: #{dqn_forward.1} parent=1 // pred_check_branch
      %228 = sbr.rel (0) target = $region53
    $region52: #{dqn_forward.1} parent=1 // pred_region
      %230 = dma.done [#allocation4], 128
    $region53: #{dqn_forward.1} parent=1 // pred_fallthru
      _
    %231 = vsyncpa [#allocation3], 1
    %232 = vsyncpa [#allocation6], 1
    %233 = vsyncpa [#allocation4], 1

</llo_original>
